<compile_context>
chip_gen: v6e
topology: v6e:2x2x1
jax: 0.10.0
libtpu: 0.0.40
codegen_flags: <defaults>
</compile_context>

<pallas_src>
import functools
import math

import jax
import jax.numpy as jnp
from jax.experimental import pallas as pl
from jax.experimental.pallas import tpu as pltpu


def _normalize_kernel(x_ref, o_ref, *, target_min, target_max, eps, groups, feat):
    # Reduction / affine math in f32 regardless of input dtype (mem-bound kernel:
    # the VPU work is free and it keeps the 1e-8 epsilon meaningful for bf16).
    x = x_ref[...].astype(jnp.float32)            # (rows, groups * feat)
    span = target_max - target_min
    if groups == 1:
        x_min = jnp.min(x, axis=1, keepdims=True)
        x_max = jnp.max(x, axis=1, keepdims=True)
        scale = span * pl.reciprocal(x_max - x_min + eps, approx=False)
        # 3-op form (sub, mul, add): numerically safe, VALU has ample slack.
        out = (x - x_min) * scale + target_min
    else:
        # Segmented reduction: each lane-row packs `groups` original rows of
        # `feat` features laid out contiguously along lanes.
        segs = []
        for s in range(groups):
            seg = x[:, s * feat:(s + 1) * feat]
            mn = jnp.min(seg, axis=1, keepdims=True)
            mx = jnp.max(seg, axis=1, keepdims=True)
            scale = span * pl.reciprocal(mx - mn + eps, approx=False)
            segs.append((seg - mn) * scale + target_min)
        out = jnp.concatenate(segs, axis=1)
    o_ref[...] = out.astype(o_ref.dtype)


def _sublane_rows(itemsize):
    # Packed-sublane alignment: 8 rows for 32-bit, 16 for 16-bit, 32 for 8-bit.
    return max(8, 32 // max(int(itemsize), 1))


def _vmem_capacity_bytes():
    try:
        cap = getattr(pltpu.get_tpu_info(), "vmem_capacity_bytes", None)
        if cap:
            return int(cap)
    except Exception:
        pass
    return 64 * 1024 * 1024  # smallest per-TC VMEM across v5e / v6e / v7x


def _pick_block_rows(rows, width, itemsize, sublane):
    """Largest sublane-aligned row tile that fits the pipelined VMEM budget."""
    phys = _vmem_capacity_bytes()
    # Pipelined working-set budget: ~half of physical VMEM, capped at 48 MiB
    # (v5e/v6e: 48 of 128 MiB; v7x: 32 of 64 MiB). Per-step input is then in the
    # multi-MiB class, amortizing the ~0.35 us per-grid-step overhead.
    budget = min(48 * 1024 * 1024, phys // 2)
    # Per-row bytes: input + output tiles (double-buffered each) plus ~2 f32
    # in-kernel temps (x staged to f32, affine result before the store cast).
    bytes_per_row = max(1, width) * (4 * int(itemsize) + 8)
    block_rows = max(sublane, (budget // bytes_per_row) // sublane * sublane)
    if rows <= block_rows:
        if rows > sublane:
            # Never emit a 1-step grid when avoidable: >=2 tiles lets the
            # "parallel" axis shard across v7x's two TensorCores.
            half = -(-rows // 2)
            block_rows = -(-half // sublane) * sublane
        else:
            block_rows = sublane
    return block_rows


def normalize_to_range(x, target_min=0.0, target_max=1.0, *, block_rows=None):
    """Normalizes each row of x (shape [batch, num_features]) to [target_min, target_max]."""
    if x.size == 0:
        raise ValueError("Input tensor cannot be empty.")
    B, F = x.shape
    itemsize = jnp.dtype(x.dtype).itemsize
    sublane = _sublane_rows(itemsize)

    # Lane packing: make the lane (last) dim a multiple of 128 by folding g rows
    # per lane-row. Skip when already lane-dense or when g would be large
    # (padding waste / unrolled-segment code blowup).
    groups = 1
    if F % 128 != 0:
        g = 128 // math.gcd(F, 128)
        if g <= 16:
            groups = g

    if groups > 1:
        b_pad = -(-B // groups) * groups
        xp = x if b_pad == B else jnp.pad(x, ((0, b_pad - B), (0, 0)))
        xp = xp.reshape(b_pad // groups, groups * F)
    else:
        b_pad = B
        xp = x

    rows, width = xp.shape
    if block_rows is None:
        block_rows = _pick_block_rows(rows, width, itemsize, sublane)
    else:
        # Align user-supplied tile to the dtype-specific packed-sublane count.
        block_rows = max(sublane, (int(block_rows) // sublane) * sublane)

    grid = (pl.cdiv(rows, block_rows),)

    kernel = functools.partial(
        _normalize_kernel,
        target_min=float(target_min),
        target_max=float(target_max),
        eps=1e-8,
        groups=groups,
        feat=F,
    )

    phys = _vmem_capacity_bytes()
    vmem_limit = min(96 * 1024 * 1024, (phys * 3) // 4)

    out = pl.pallas_call(
        kernel,
        out_shape=jax.ShapeDtypeStruct((rows, width), x.dtype),
        grid_spec=pltpu.PrefetchScalarGridSpec(
            num_scalar_prefetch=0,
            grid=grid,
            in_specs=[pl.BlockSpec((block_rows, width), lambda i: (i, 0))],
            out_specs=pl.BlockSpec((block_rows, width), lambda i: (i, 0)),
        ),
        compiler_params=pltpu.CompilerParams(
            dimension_semantics=("parallel",),
            vmem_limit_bytes=vmem_limit,
        ),
    )(xp)

    if groups > 1:
        out = out.reshape(b_pad, F)
        if b_pad != B:
            out = out[:B]
    return out


def _reference(x, target_min=0.0, target_max=1.0):
    xf = x.astype(jnp.float32)
    x_min = jnp.min(xf, axis=1, keepdims=True)
    x_max = jnp.max(xf, axis=1, keepdims=True)
    xn = (xf - x_min) / (x_max - x_min + 1e-8)
    return (xn * (target_max - target_min) + target_min).astype(x.dtype)


if __name__ == "__main__":
    key = jax.random.PRNGKey(0)

    # Primary test: module's (batch_size, num_features) convention; F=32 takes
    # the lane-packed path (g=4, batch padded 2 -> 4, packed width 128).
    batch, num_features = 2, 32
    x = jax.random.normal(key, (batch, num_features), dtype=jnp.float32) * 3.0 + 1.5

    target_min, target_max = -1.0, 1.0
    out = normalize_to_range(x, target_min=target_min, target_max=target_max)
    out = jax.block_until_ready(out)

    ref = _reference(x, target_min, target_max)
    assert out.shape == x.shape and out.dtype == x.dtype
    assert jnp.allclose(out, ref, atol=1e-5, rtol=1e-5), "mismatch vs reference (primary)"

    # Secondary test: lane-dense F (multiple of 128), non-multiple-of-8 batch,
    # forced multi-step grid (partial-tile path).
    k2 = jax.random.PRNGKey(1)
    x2 = jax.random.normal(k2, (13, 128), dtype=jnp.float32) * 2.0 - 0.5
    out2 = jax.block_until_ready(
        normalize_to_range(x2, target_min=0.0, target_max=1.0, block_rows=8)
    )
    ref2 = _reference(x2, 0.0, 1.0)
    assert jnp.allclose(out2, ref2, atol=1e-5, rtol=1e-5), "mismatch vs reference (partial tile)"

    # Third test: bf16 input (16-row packed sublane), F=48 -> g=8 packing with
    # batch padding (37 -> 40).
    k3 = jax.random.PRNGKey(2)
    x3 = (jax.random.normal(k3, (37, 48), dtype=jnp.float32) * 5.0 + 2.0).astype(jnp.bfloat16)
    out3 = jax.block_until_ready(normalize_to_range(x3, target_min=0.0, target_max=1.0))
    ref3 = _reference(x3, 0.0, 1.0)
    assert out3.shape == x3.shape and out3.dtype == x3.dtype
    assert jnp.allclose(out3.astype(jnp.float32), ref3.astype(jnp.float32),
                        atol=2e-2, rtol=2e-2), "mismatch vs reference (bf16 packed)"

    print("KERNEL_OK")
</pallas_src>

<mosaic_0001>
module attributes {stable_mosaic.version = 11 : i64} {
  func.func @_normalize_kernel(%arg0: i32, %arg1: memref<8x128xf32, #tpu.memory_space<vmem>>, %arg2: memref<8x128xf32, #tpu.memory_space<vmem>>) attributes {dimension_semantics = [#tpu.dimension_semantics<parallel>], iteration_bounds = array<i64: 1>, scalar_prefetch = 0 : i64, scratch_operands = 0 : i64, tpu.core_type = #tpu.core_type<tc>, window_params = [{transform_indices = @transform_0, window_bounds = array<i64: 8, 128>}, {transform_indices = @transform_1, window_bounds = array<i64: 8, 128>}]} {
    %c0 = arith.constant 0 : index
    %c0_0 = arith.constant 0 : index
    %0 = vector.load %arg1[%c0, %c0_0] : memref<8x128xf32, #tpu.memory_space<vmem>>, vector<8x128xf32>
    %1 = vector.extract_strided_slice %0 {offsets = [0, 0], sizes = [8, 32], strides = [1, 1]} : vector<8x128xf32> to vector<8x32xf32>
    %cst = arith.constant dense<0x7F800000> : vector<8xf32>
    %2 = vector.multi_reduction <minimumf>, %1, %cst [1] : vector<8x32xf32> to vector<8xf32>
    %3 = vector.shape_cast %2 : vector<8xf32> to vector<8x1xf32>
    %cst_1 = arith.constant dense<0xFF800000> : vector<8xf32>
    %4 = vector.multi_reduction <maximumf>, %1, %cst_1 [1] : vector<8x32xf32> to vector<8xf32>
    %5 = vector.shape_cast %4 : vector<8xf32> to vector<8x1xf32>
    %6 = arith.subf %5, %3 : vector<8x1xf32>
    %cst_2 = arith.constant 9.99999993E-9 : f32
    %7 = vector.broadcast %cst_2 : f32 to vector<8x1xf32>
    %8 = arith.addf %6, %7 : vector<8x1xf32>
    %9 = tpu.reciprocal %8 : vector<8x1xf32> -> vector<8x1xf32>
    %cst_3 = arith.constant 2.000000e+00 : f32
    %10 = vector.broadcast %cst_3 : f32 to vector<8x1xf32>
    %11 = arith.mulf %10, %9 : vector<8x1xf32>
    %12 = vector.broadcast %3 : vector<8x1xf32> to vector<8x32xf32>
    %13 = arith.subf %1, %12 : vector<8x32xf32>
    %14 = vector.broadcast %11 : vector<8x1xf32> to vector<8x32xf32>
    %15 = arith.mulf %13, %14 : vector<8x32xf32>
    %cst_4 = arith.constant -1.000000e+00 : f32
    %16 = vector.broadcast %cst_4 : f32 to vector<8x32xf32>
    %17 = arith.addf %15, %16 : vector<8x32xf32>
    %18 = vector.extract_strided_slice %0 {offsets = [0, 32], sizes = [8, 32], strides = [1, 1]} : vector<8x128xf32> to vector<8x32xf32>
    %cst_5 = arith.constant dense<0x7F800000> : vector<8xf32>
    %19 = vector.multi_reduction <minimumf>, %18, %cst_5 [1] : vector<8x32xf32> to vector<8xf32>
    %20 = vector.shape_cast %19 : vector<8xf32> to vector<8x1xf32>
    %cst_6 = arith.constant dense<0xFF800000> : vector<8xf32>
    %21 = vector.multi_reduction <maximumf>, %18, %cst_6 [1] : vector<8x32xf32> to vector<8xf32>
    %22 = vector.shape_cast %21 : vector<8xf32> to vector<8x1xf32>
    %23 = arith.subf %22, %20 : vector<8x1xf32>
    %cst_7 = arith.constant 9.99999993E-9 : f32
    %24 = vector.broadcast %cst_7 : f32 to vector<8x1xf32>
    %25 = arith.addf %23, %24 : vector<8x1xf32>
    %26 = tpu.reciprocal %25 : vector<8x1xf32> -> vector<8x1xf32>
    %cst_8 = arith.constant 2.000000e+00 : f32
    %27 = vector.broadcast %cst_8 : f32 to vector<8x1xf32>
    %28 = arith.mulf %27, %26 : vector<8x1xf32>
    %29 = vector.broadcast %20 : vector<8x1xf32> to vector<8x32xf32>
    %30 = arith.subf %18, %29 : vector<8x32xf32>
    %31 = vector.broadcast %28 : vector<8x1xf32> to vector<8x32xf32>
    %32 = arith.mulf %30, %31 : vector<8x32xf32>
    %cst_9 = arith.constant -1.000000e+00 : f32
    %33 = vector.broadcast %cst_9 : f32 to vector<8x32xf32>
    %34 = arith.addf %32, %33 : vector<8x32xf32>
    %35 = vector.extract_strided_slice %0 {offsets = [0, 64], sizes = [8, 32], strides = [1, 1]} : vector<8x128xf32> to vector<8x32xf32>
    %cst_10 = arith.constant dense<0x7F800000> : vector<8xf32>
    %36 = vector.multi_reduction <minimumf>, %35, %cst_10 [1] : vector<8x32xf32> to vector<8xf32>
    %37 = vector.shape_cast %36 : vector<8xf32> to vector<8x1xf32>
    %cst_11 = arith.constant dense<0xFF800000> : vector<8xf32>
    %38 = vector.multi_reduction <maximumf>, %35, %cst_11 [1] : vector<8x32xf32> to vector<8xf32>
    %39 = vector.shape_cast %38 : vector<8xf32> to vector<8x1xf32>
    %40 = arith.subf %39, %37 : vector<8x1xf32>
    %cst_12 = arith.constant 9.99999993E-9 : f32
    %41 = vector.broadcast %cst_12 : f32 to vector<8x1xf32>
    %42 = arith.addf %40, %41 : vector<8x1xf32>
    %43 = tpu.reciprocal %42 : vector<8x1xf32> -> vector<8x1xf32>
    %cst_13 = arith.constant 2.000000e+00 : f32
    %44 = vector.broadcast %cst_13 : f32 to vector<8x1xf32>
    %45 = arith.mulf %44, %43 : vector<8x1xf32>
    %46 = vector.broadcast %37 : vector<8x1xf32> to vector<8x32xf32>
    %47 = arith.subf %35, %46 : vector<8x32xf32>
    %48 = vector.broadcast %45 : vector<8x1xf32> to vector<8x32xf32>
    %49 = arith.mulf %47, %48 : vector<8x32xf32>
    %cst_14 = arith.constant -1.000000e+00 : f32
    %50 = vector.broadcast %cst_14 : f32 to vector<8x32xf32>
    %51 = arith.addf %49, %50 : vector<8x32xf32>
    %52 = vector.extract_strided_slice %0 {offsets = [0, 96], sizes = [8, 32], strides = [1, 1]} : vector<8x128xf32> to vector<8x32xf32>
    %cst_15 = arith.constant dense<0x7F800000> : vector<8xf32>
    %53 = vector.multi_reduction <minimumf>, %52, %cst_15 [1] : vector<8x32xf32> to vector<8xf32>
    %54 = vector.shape_cast %53 : vector<8xf32> to vector<8x1xf32>
    %cst_16 = arith.constant dense<0xFF800000> : vector<8xf32>
    %55 = vector.multi_reduction <maximumf>, %52, %cst_16 [1] : vector<8x32xf32> to vector<8xf32>
    %56 = vector.shape_cast %55 : vector<8xf32> to vector<8x1xf32>
    %57 = arith.subf %56, %54 : vector<8x1xf32>
    %cst_17 = arith.constant 9.99999993E-9 : f32
    %58 = vector.broadcast %cst_17 : f32 to vector<8x1xf32>
    %59 = arith.addf %57, %58 : vector<8x1xf32>
    %60 = tpu.reciprocal %59 : vector<8x1xf32> -> vector<8x1xf32>
    %cst_18 = arith.constant 2.000000e+00 : f32
    %61 = vector.broadcast %cst_18 : f32 to vector<8x1xf32>
    %62 = arith.mulf %61, %60 : vector<8x1xf32>
    %63 = vector.broadcast %54 : vector<8x1xf32> to vector<8x32xf32>
    %64 = arith.subf %52, %63 : vector<8x32xf32>
    %65 = vector.broadcast %62 : vector<8x1xf32> to vector<8x32xf32>
    %66 = arith.mulf %64, %65 : vector<8x32xf32>
    %cst_19 = arith.constant -1.000000e+00 : f32
    %67 = vector.broadcast %cst_19 : f32 to vector<8x32xf32>
    %68 = arith.addf %66, %67 : vector<8x32xf32>
    %69 = tpu.concatenate %17, %34, %51, %68 in 1 : vector<8x32xf32>, vector<8x32xf32>, vector<8x32xf32>, vector<8x32xf32> -> vector<8x128xf32>
    %c0_20 = arith.constant 0 : index
    %c0_21 = arith.constant 0 : index
    %70 = vector.load %arg2[%c0_20, %c0_21] : memref<8x128xf32, #tpu.memory_space<vmem>>, vector<8x128xf32>
    tpu.vector_store %arg2[%c0_20, %c0_21], %69 {strides = array<i32>} : memref<8x128xf32, #tpu.memory_space<vmem>>, vector<8x128xf32>,
    return
  }
  func.func @transform_0(%arg0: i32) -> (i32, i32) {
    %c0_i32 = arith.constant 0 : i32
    %c0_i32_0 = arith.constant 0 : i32
    return %arg0, %c0_i32 : i32, i32
  }
  func.func @transform_1(%arg0: i32) -> (i32, i32) {
    %c0_i32 = arith.constant 0 : i32
    %c0_i32_0 = arith.constant 0 : i32
    return %arg0, %c0_i32 : i32, i32
  }
}

</mosaic_0001>

<llo_original>
// kernel: tpu_custom_call.1
$region0: #{tpu_custom_call.1}
  #allocation0 [shape = 'u32[]', space=smem, size = 0x4, offset = 0x4, fixed_abs, tag = 'smem constant byte address 0x4 - core index']
  #allocation1 [shape = 'u32[144,128]{1,0:T(1,128)}', space=vmem, size = 0x12000, scoped, tag = 'internal scratch']
  %s0 = inlined_call_operand.hbm [shape: f32[1,128], index: 0, kind: input, shape index: {}]
  %s1 = inlined_call_operand.hbm [shape: f32[1,128], index: 1, kind: output, shape index: {}]
  %s2 = sld [smem:[#allocation0]]
  $region18: #{tpu_custom_call.1} parent=0
    _
  %s4 = ssub.s32 1, %s2
  %s5 = scalar_select 0, %s4, %s2
  $region1: #{tpu_custom_call.1} parent=0
    #allocation2 [shape = 'u8[4096]{0}', space=vmem, size = 0x1000, scoped, tag = 'input window, operand 0, single buffered']
    #allocation3 [shape = 's32[1]{0}', space=sflag, size = 0x4, scoped, tag = 'scoped memory for tpu_custom_call.1']
    #allocation4 [shape = 's32[1]{0}', space=sflag, size = 0x4, scoped, tag = 'scoped memory for tpu_custom_call.1']
    #allocation5 [shape = 'u8[4096]{0}', space=vmem, size = 0x1000, scoped, tag = 'output window, operand 0, single buffered']
    %6 = vsyncpa [#allocation3], 0
    %7 = vsyncpa [#allocation4], 0
    // Predicated region
    $region2: #{tpu_custom_call.1} parent=1 // pred_check
      _
    $region3: #{tpu_custom_call.1} parent=1 // pred_check_branch
      %9 = sbr.rel (0) target = $region5
    $region4: #{tpu_custom_call.1} parent=1 // pred_region
      %s11 = ssub.s32 128, 16
      %12 = vsyncadd [#allocation3], %s11
      %s13 = sshll.u32 [#allocation2], 4
      %s14 = int_to_ptr.vmem [resolvable:$true] %s13
      %19 = dma.hbm_to_vmem [thread:$0]  %s0, 16, %s14, [#allocation3], 16, 16, 1
    $region5: #{tpu_custom_call.1} parent=1 // pred_fallthru
      _
    // Predicated region
    $region6: #{tpu_custom_call.1} parent=1 // pred_check
      _
    $region7: #{tpu_custom_call.1} parent=1 // pred_check_branch
      %21 = sbr.rel (0) target = $region9
    $region8: #{tpu_custom_call.1} parent=1 // pred_region
      %22 = dma.done [#allocation3], 128
    $region9: #{tpu_custom_call.1} parent=1 // pred_fallthru
      _
    %v23 = vld [vmem:[#allocation2] sm:$0xff]
    %vm24 = vcmask 261120
    %v25 = vsel %vm24, %v23, inf
    %26 = vmin.xlane.f32.xlu0 %v25
    %v27 = vpop.xlane.xlu0 %26
    %v28 = vsel %vm24, %v23, -inf
    %29 = vmax.xlane.f32.xlu0 %v28
    %v30 = vpop.xlane.xlu0 %29
    %v31 = vsub.f32 %v30, %v27
    %v32 = vadd.f32 %v31, 1e-08
    %v33 = vrcp.pop %v32
    %v34 = vmul.f32 %v33, 2.0
    %v35 = vsub.f32 %v23, %v27
    %v36 = vmul.f32 %v35, %v34
    %v37 = vadd.f32 %v36, -1.0
    %vm38 = vcmask 523520
    %v39 = vsel %vm38, %v23, inf
    %40 = vmin.xlane.f32.xlu0 %v39
    %v41 = vpop.xlane.xlu0 %40
    %v42 = vsel %vm38, %v23, -inf
    %43 = vmax.xlane.f32.xlu0 %v42
    %v44 = vpop.xlane.xlu0 %43
    %v45 = vsub.f32 %v44, %v41
    %v46 = vadd.f32 %v45, 1e-08
    %v47 = vrcp.pop %v46
    %v48 = vmul.f32 %v47, 2.0
    %v49 = vsub.f32 %v23, %v41
    %v50 = vmul.f32 %v49, %v48
    %v51 = vadd.f32 %v50, -1.0
    %vm52 = vcmask 785920
    %v53 = vsel %vm52, %v23, inf
    %54 = vmin.xlane.f32.xlu0 %v53
    %v55 = vpop.xlane.xlu0 %54
    %v56 = vsel %vm52, %v23, -inf
    %57 = vmax.xlane.f32.xlu0 %v56
    %v58 = vpop.xlane.xlu0 %57
    %v59 = vsub.f32 %v58, %v55
    %v60 = vadd.f32 %v59, 1e-08
    %v61 = vrcp.pop %v60
    %v62 = vmul.f32 %v61, 2.0
    %v63 = vsub.f32 %v23, %v55
    %v64 = vmul.f32 %v63, %v62
    %v65 = vadd.f32 %v64, -1.0
    %vm66 = vcmask 1048320
    %v67 = vsel %vm66, %v23, inf
    %68 = vmin.xlane.f32.xlu0 %v67
    %v69 = vpop.xlane.xlu0 %68
    %v70 = vsel %vm66, %v23, -inf
    %71 = vmax.xlane.f32.xlu0 %v70
    %v72 = vpop.xlane.xlu0 %71
    %v73 = vsub.f32 %v72, %v69
    %v74 = vadd.f32 %v73, 1e-08
    %v75 = vrcp.pop %v74
    %v76 = vmul.f32 %v75, 2.0
    %v77 = vsub.f32 %v23, %v69
    %v78 = vmul.f32 %v77, %v76
    %v79 = vadd.f32 %v78, -1.0
    %v80 = vsel %vm24, %v37, %v51
    %vm81 = vcmask 523264
    %v82 = vsel %vm81, %v80, %v65
    %vm83 = vcmask 785408
    %v84 = vsel %vm83, %v82, %v79
    %85 = vst [vmem:[#allocation5] sm:$0xff] %v84
    // Predicated region
    $region10: #{tpu_custom_call.1} parent=1 // pred_check
      _
    $region11: #{tpu_custom_call.1} parent=1 // pred_check_branch
      %87 = sbr.rel (0) target = $region13
    $region12: #{tpu_custom_call.1} parent=1 // pred_region
      %s89 = ssub.s32 128, 16
      %90 = vsyncadd [#allocation4], %s89
      %s91 = sshll.u32 [#allocation5], 4
      %s92 = int_to_ptr.vmem [resolvable:$true] %s91
      %97 = dma.vmem_to_hbm [thread:$0]  %s92, 16, %s1, [#allocation4], 16, 16, 1
    $region13: #{tpu_custom_call.1} parent=1 // pred_fallthru
      _
    // Predicated region
    $region14: #{tpu_custom_call.1} parent=1 // pred_check
      _
    $region15: #{tpu_custom_call.1} parent=1 // pred_check_branch
      %99 = sbr.rel (0) target = $region17
    $region16: #{tpu_custom_call.1} parent=1 // pred_region
      %100 = dma.done [#allocation4], 128
    $region17: #{tpu_custom_call.1} parent=1 // pred_fallthru
      _
    %101 = vsyncpa [#allocation3], 1
    %102 = vsyncpa [#allocation4], 1

</llo_original>
